<compile_context>
chip_gen: v5e
topology: v5e:2x2
jax: 0.10.0
libtpu: 0.0.40
codegen_flags: <defaults>
</compile_context>

<pallas_src>
import random
import numpy as np

import jax
import jax.numpy as jnp
from jax.experimental import pallas as pl
from jax.experimental import pallas as pl  # noqa: F811 (kept single alias)
from jax.experimental.pallas import tpu as pltpu  # noqa: F401  (not needed at these shapes)

# ----------------------------- config -------------------------------------
BATCH = 2
SEQ = 8                    # power of 2 (matches the module's padded gather)
HIDDEN = 32
NUM_HEADS = 2              # <= ceil(log2(SEQ)) -> deterministic flip branch
HEAD_SIZE = HIDDEN // NUM_HEADS
BS = BATCH * SEQ
LN_EPS = 1e-12             # BERT layer-norm eps


# ----------------------- flip-index construction ---------------------------
def build_flip_indices(seq_len, num_heads):
    """Replicates FlipSelfAttention.length_flip_index_dict construction."""
    random.seed(0)  # deterministic if the random-bias branch is taken
    pad_len = int(2 ** np.ceil(np.log2(seq_len)))
    log_len = int(np.ceil(np.log2(seq_len)))
    tempindex = np.arange(pad_len)
    tensors = []
    if num_heads <= log_len:
        for i in range(num_heads):
            pp = int(2 ** (np.ceil(np.log2(seq_len)) - 1 - i))
            temp = np.reshape(tempindex, (pp, pad_len // pp))
            tensors.append(np.flip(temp % pad_len, axis=-1).flatten())
    else:
        for i in range(num_heads):
            pp = int(2 ** (np.ceil(np.log2(seq_len)) - 1 - i % log_len))
            temp = np.reshape(tempindex, (pp, pad_len // pp))
            if i < np.ceil(np.log2(seq_len)) and i < num_heads // 2:
                bias = 0
            else:
                bias = random.randint(1, pad_len - 1)
            tensors.append(np.flip((temp + bias) % pad_len, axis=-1).flatten())
    return np.stack(tensors).astype(np.int32)  # (num_heads, pad_len)


def build_big_perm(flip_idx, batch, seq):
    """Static one-hot operator P of shape (B*S, NH*B*S).

    (P @ k_stack)[b*S+s, c] == k[b*S + flip_idx[h(c), s], c] when k_stack is
    NH sublane-stacked copies of k, each masked to its head's lane block.
    """
    nh = flip_idx.shape[0]
    bs = batch * seq
    p = np.zeros((bs, nh * bs), dtype=np.float32)
    for b in range(batch):
        for s in range(seq):
            row = b * seq + s
            for h in range(nh):
                p[row, h * bs + b * seq + int(flip_idx[h, s])] = 1.0
    return p


def build_head_mask_stack(batch, seq, num_heads, head_size):
    """(NH*B*S, H) 0/1 mask: rows [h*BS:(h+1)*BS] keep only head h's lanes."""
    bs = batch * seq
    hidden = num_heads * head_size
    m = np.zeros((num_heads * bs, hidden), dtype=np.float32)
    for h in range(num_heads):
        m[h * bs:(h + 1) * bs, h * head_size:(h + 1) * head_size] = 1.0
    return m


# ------------------------------ kernel -------------------------------------
def flip_attention_kernel(x_ref, w3_ref, vec_ref, pbig_ref, mask_ref, o_ref):
    x = x_ref[...]                                                  # (B*S, H)

    # Packed weights: rows [0:H)=Wq, [H:2H)=Wk, [2H:3H)=Wo  (8-aligned slices).
    wq = w3_ref[0 * HIDDEN:1 * HIDDEN, :]
    wk = w3_ref[1 * HIDDEN:2 * HIDDEN, :]
    wo = w3_ref[2 * HIDDEN:3 * HIDDEN, :]

    # Packed, pre-broadcast row vectors (each slice is a full (B*S, H) tile).
    bq    = vec_ref[0 * BS:1 * BS, :]
    bk    = vec_ref[1 * BS:2 * BS, :]
    bo    = vec_ref[2 * BS:3 * BS, :]
    gamma = vec_ref[3 * BS:4 * BS, :]
    beta  = vec_ref[4 * BS:5 * BS, :]

    # Q / K projections over the fused token slab (one MXU pass each).
    q = jnp.dot(x, wq, preferred_element_type=jnp.float32) + bq
    k = jnp.dot(x, wk, preferred_element_type=jnp.float32) + bk

    # Per-head sequence flip for ALL heads and batches in one contraction:
    # sublane-stack k (one copy per head), mask each copy to its head's lane
    # block, then apply the static block-diagonal one-hot operator.
    k_stack = jnp.concatenate([k] * NUM_HEADS, axis=0) * mask_ref[...]  # (NH*B*S, H)
    flipped = jnp.dot(pbig_ref[...], k_stack,
                      preferred_element_type=jnp.float32)               # (B*S, H)

    mixed = q * flipped                                                 # (B*S, H)

    # BertSelfOutput: dense -> (dropout = identity at eval) -> residual -> LN
    out = jnp.dot(mixed, wo, preferred_element_type=jnp.float32) + bo
    res = out + x
    mean = jnp.mean(res, axis=-1, keepdims=True)
    var = jnp.mean((res - mean) ** 2, axis=-1, keepdims=True)
    normed = (res - mean) * jax.lax.rsqrt(var + LN_EPS)
    o_ref[...] = normed * gamma + beta


# ------------------------------ wrapper ------------------------------------
def flip_attention(x, params, pbig, mask_stack):
    B, S, H = x.shape
    wq, bq, wk, bk, wo, bo, gamma, beta = params
    bs = B * S
    xf = x.reshape(bs, H)                         # fused token slab

    # Pack operands once (parameters are static): 11 -> 5 DMA descriptors.
    w3 = jnp.concatenate([wq, wk, wo], axis=0)    # (3H, H)
    vecs = jnp.concatenate([
        jnp.broadcast_to(bq, (bs, H)),
        jnp.broadcast_to(bk, (bs, H)),
        jnp.broadcast_to(bo, (bs, H)),
        jnp.broadcast_to(gamma, (bs, H)),
        jnp.broadcast_to(beta, (bs, H)),
    ], axis=0)                                    # (5*B*S, H)

    out_flat = pl.pallas_call(
        flip_attention_kernel,
        out_shape=jax.ShapeDtypeStruct((bs, H), jnp.float32),
        # No grid: one invocation, all arrays resident in VMEM (tiny shapes).
    )(xf, w3, vecs, pbig, mask_stack)

    return out_flat.reshape(B, S, H)


# --------------------------- pure-JAX reference -----------------------------
def flip_attention_ref(x, params, flip_idx):
    wq, bq, wk, bk, wo, bo, gamma, beta = params
    B, S, H = x.shape
    q = x @ wq + bq[0]
    k = x @ wk + bk[0]
    qh = q.reshape(B, S, NUM_HEADS, HEAD_SIZE).transpose(0, 2, 1, 3)
    kh = k.reshape(B, S, NUM_HEADS, HEAD_SIZE).transpose(0, 2, 1, 3)
    flipped = jnp.stack(
        [kh[:, h][:, flip_idx[h], :] for h in range(NUM_HEADS)], axis=1)
    mixed = (qh * flipped).transpose(0, 2, 1, 3).reshape(B, S, H)
    out = mixed @ wo + bo[0]
    res = out + x
    mean = jnp.mean(res, axis=-1, keepdims=True)
    var = jnp.mean((res - mean) ** 2, axis=-1, keepdims=True)
    return (res - mean) * jax.lax.rsqrt(var + LN_EPS) * gamma[0] + beta[0]


# ------------------------------- main ---------------------------------------
if __name__ == "__main__":
    assert SEQ == int(2 ** np.ceil(np.log2(SEQ))), "SEQ must be a power of 2"

    key = jax.random.PRNGKey(0)
    kx, kq, kk, ko, kbq, kbk, kbo = jax.random.split(key, 7)

    x = jax.random.normal(kx, (BATCH, SEQ, HIDDEN), dtype=jnp.float32)
    # attention_mask is accepted but unused by the PyTorch forward.
    attention_mask = jnp.zeros((BATCH, 1, 1, SEQ), dtype=jnp.float32)  # unused

    scale = 0.02
    # weights stored as (in, out) so the kernel does x @ W + b
    wq = scale * jax.random.normal(kq, (HIDDEN, HIDDEN), dtype=jnp.float32)
    wk = scale * jax.random.normal(kk, (HIDDEN, HIDDEN), dtype=jnp.float32)
    wo = scale * jax.random.normal(ko, (HIDDEN, HIDDEN), dtype=jnp.float32)
    bq = scale * jax.random.normal(kbq, (1, HIDDEN), dtype=jnp.float32)
    bk = scale * jax.random.normal(kbk, (1, HIDDEN), dtype=jnp.float32)
    bo = scale * jax.random.normal(kbo, (1, HIDDEN), dtype=jnp.float32)
    gamma = jnp.ones((1, HIDDEN), dtype=jnp.float32)
    beta = jnp.zeros((1, HIDDEN), dtype=jnp.float32)
    params = (wq, bq, wk, bk, wo, bo, gamma, beta)

    flip_idx = build_flip_indices(SEQ, NUM_HEADS)                         # (NH, S)
    pbig = jnp.asarray(build_big_perm(flip_idx, BATCH, SEQ))              # (B*S, NH*B*S)
    mask_stack = jnp.asarray(
        build_head_mask_stack(BATCH, SEQ, NUM_HEADS, HEAD_SIZE))          # (NH*B*S, H)

    out = flip_attention(x, params, pbig, mask_stack)
    out = jax.block_until_ready(out)

    ref = flip_attention_ref(x, params, flip_idx)
    np.testing.assert_allclose(np.asarray(out), np.asarray(ref),
                               rtol=1e-5, atol=1e-5)
    print("KERNEL_OK")
</pallas_src>

<mosaic_0001>
module attributes {stable_mosaic.version = 11 : i64} {
  func.func @flip_attention_kernel(%arg0: memref<16x32xf32, #tpu.memory_space<vmem>>, %arg1: memref<96x32xf32, #tpu.memory_space<vmem>>, %arg2: memref<80x32xf32, #tpu.memory_space<vmem>>, %arg3: memref<16x32xf32, #tpu.memory_space<vmem>>, %arg4: memref<32x32xf32, #tpu.memory_space<vmem>>, %arg5: memref<16x32xf32, #tpu.memory_space<vmem>>) attributes {dimension_semantics = [], scalar_prefetch = 0 : i64, scratch_operands = 0 : i64, tpu.core_type = #tpu.core_type<tc>} {
    %c0 = arith.constant 0 : index
    %c0_0 = arith.constant 0 : index
    %0 = vector.load %arg0[%c0, %c0_0] : memref<16x32xf32, #tpu.memory_space<vmem>>, vector<16x32xf32>
    %c0_1 = arith.constant 0 : index
    %c0_2 = arith.constant 0 : index
    %1 = vector.load %arg1[%c0_1, %c0_2] : memref<96x32xf32, #tpu.memory_space<vmem>>, vector<32x32xf32>
    %c32 = arith.constant 32 : index
    %c0_3 = arith.constant 0 : index
    %2 = vector.load %arg1[%c32, %c0_3] : memref<96x32xf32, #tpu.memory_space<vmem>>, vector<32x32xf32>
    %c64 = arith.constant 64 : index
    %c0_4 = arith.constant 0 : index
    %3 = vector.load %arg1[%c64, %c0_4] : memref<96x32xf32, #tpu.memory_space<vmem>>, vector<32x32xf32>
    %c0_5 = arith.constant 0 : index
    %c0_6 = arith.constant 0 : index
    %4 = vector.load %arg2[%c0_5, %c0_6] : memref<80x32xf32, #tpu.memory_space<vmem>>, vector<16x32xf32>
    %c16 = arith.constant 16 : index
    %c0_7 = arith.constant 0 : index
    %5 = vector.load %arg2[%c16, %c0_7] : memref<80x32xf32, #tpu.memory_space<vmem>>, vector<16x32xf32>
    %c32_8 = arith.constant 32 : index
    %c0_9 = arith.constant 0 : index
    %6 = vector.load %arg2[%c32_8, %c0_9] : memref<80x32xf32, #tpu.memory_space<vmem>>, vector<16x32xf32>
    %c48 = arith.constant 48 : index
    %c0_10 = arith.constant 0 : index
    %7 = vector.load %arg2[%c48, %c0_10] : memref<80x32xf32, #tpu.memory_space<vmem>>, vector<16x32xf32>
    %c64_11 = arith.constant 64 : index
    %c0_12 = arith.constant 0 : index
    %8 = vector.load %arg2[%c64_11, %c0_12] : memref<80x32xf32, #tpu.memory_space<vmem>>, vector<16x32xf32>
    %cst = arith.constant dense<0.000000e+00> : vector<16x32xf32>
    %9 = tpu.matmul %0, %1, %cst {dimension_numbers = #tpu.dot_dimension_numbers<[1], [0], [0], [1], [0, 0, 1, 1], [], []>} : vector<16x32xf32>, vector<32x32xf32>, vector<16x32xf32> -> vector<16x32xf32>
    %10 = arith.addf %9, %4 : vector<16x32xf32>
    %cst_13 = arith.constant dense<0.000000e+00> : vector<16x32xf32>
    %11 = tpu.matmul %0, %2, %cst_13 {dimension_numbers = #tpu.dot_dimension_numbers<[1], [0], [0], [1], [0, 0, 1, 1], [], []>} : vector<16x32xf32>, vector<32x32xf32>, vector<16x32xf32> -> vector<16x32xf32>
    %12 = arith.addf %11, %5 : vector<16x32xf32>
    %13 = tpu.concatenate %12, %12 in 0 : vector<16x32xf32>, vector<16x32xf32> -> vector<32x32xf32>
    %c0_14 = arith.constant 0 : index
    %c0_15 = arith.constant 0 : index
    %14 = vector.load %arg4[%c0_14, %c0_15] : memref<32x32xf32, #tpu.memory_space<vmem>>, vector<32x32xf32>
    %15 = arith.mulf %13, %14 : vector<32x32xf32>
    %c0_16 = arith.constant 0 : index
    %c0_17 = arith.constant 0 : index
    %16 = vector.load %arg3[%c0_16, %c0_17] : memref<16x32xf32, #tpu.memory_space<vmem>>, vector<16x32xf32>
    %cst_18 = arith.constant dense<0.000000e+00> : vector<16x32xf32>
    %17 = tpu.matmul %16, %15, %cst_18 {dimension_numbers = #tpu.dot_dimension_numbers<[1], [0], [0], [1], [0, 0, 1, 1], [], []>} : vector<16x32xf32>, vector<32x32xf32>, vector<16x32xf32> -> vector<16x32xf32>
    %18 = arith.mulf %10, %17 : vector<16x32xf32>
    %cst_19 = arith.constant dense<0.000000e+00> : vector<16x32xf32>
    %19 = tpu.matmul %18, %3, %cst_19 {dimension_numbers = #tpu.dot_dimension_numbers<[1], [0], [0], [1], [0, 0, 1, 1], [], []>} : vector<16x32xf32>, vector<32x32xf32>, vector<16x32xf32> -> vector<16x32xf32>
    %20 = arith.addf %19, %6 : vector<16x32xf32>
    %21 = arith.addf %20, %0 : vector<16x32xf32>
    %cst_20 = arith.constant dense<0.000000e+00> : vector<16xf32>
    %22 = vector.multi_reduction <add>, %21, %cst_20 [1] : vector<16x32xf32> to vector<16xf32>
    %23 = vector.shape_cast %22 : vector<16xf32> to vector<16x1xf32>
    %cst_21 = arith.constant 3.200000e+01 : f32
    %24 = vector.broadcast %cst_21 : f32 to vector<16x1xf32>
    %25 = arith.divf %23, %24 : vector<16x1xf32>
    %26 = vector.broadcast %25 : vector<16x1xf32> to vector<16x32xf32>
    %27 = arith.subf %21, %26 : vector<16x32xf32>
    %28 = arith.mulf %27, %27 : vector<16x32xf32>
    %cst_22 = arith.constant dense<0.000000e+00> : vector<16xf32>
    %29 = vector.multi_reduction <add>, %28, %cst_22 [1] : vector<16x32xf32> to vector<16xf32>
    %30 = vector.shape_cast %29 : vector<16xf32> to vector<16x1xf32>
    %cst_23 = arith.constant 3.200000e+01 : f32
    %31 = vector.broadcast %cst_23 : f32 to vector<16x1xf32>
    %32 = arith.divf %30, %31 : vector<16x1xf32>
    %33 = vector.broadcast %25 : vector<16x1xf32> to vector<16x32xf32>
    %34 = arith.subf %21, %33 : vector<16x32xf32>
    %cst_24 = arith.constant 9.99999996E-13 : f32
    %35 = vector.broadcast %cst_24 : f32 to vector<16x1xf32>
    %36 = arith.addf %32, %35 : vector<16x1xf32>
    %37 = math.rsqrt %36 : vector<16x1xf32>
    %38 = vector.broadcast %37 : vector<16x1xf32> to vector<16x32xf32>
    %39 = arith.mulf %34, %38 : vector<16x32xf32>
    %40 = arith.mulf %39, %7 : vector<16x32xf32>
    %41 = arith.addf %40, %8 : vector<16x32xf32>
    %c0_25 = arith.constant 0 : index
    %c0_26 = arith.constant 0 : index
    %42 = vector.load %arg5[%c0_25, %c0_26] : memref<16x32xf32, #tpu.memory_space<vmem>>, vector<16x32xf32>
    tpu.vector_store %arg5[%c0_25, %c0_26], %41 {strides = array<i32>} : memref<16x32xf32, #tpu.memory_space<vmem>>, vector<16x32xf32>,
    return
  }
}

</mosaic_0001>

<llo_original>
// kernel: tpu_custom_call.1
$region0: #{tpu_custom_call.1}
  #allocation0 [shape = 'u32[]', space=smem, size = 0x4, offset = 0x4, fixed_abs, tag = 'smem constant byte address 0x4 - core index']
  #allocation1 [shape = 'u32[72,128]{1,0:T(1,128)}', space=vmem, size = 0x9000, scoped, tag = 'internal scratch']
  %s0 = inlined_call_operand.vmem [shape: f32[16,32], index: 0, kind: input, shape index: {}]
  %s1 = inlined_call_operand.vmem [shape: f32[96,32], index: 1, kind: input, shape index: {}]
  %s2 = inlined_call_operand.vmem [shape: f32[80,32], index: 2, kind: input, shape index: {}]
  %s3 = inlined_call_operand.vmem [shape: f32[16,32], index: 3, kind: input, shape index: {}]
  %s4 = inlined_call_operand.vmem [shape: f32[32,32], index: 4, kind: input, shape index: {}]
  %s5 = inlined_call_operand.hbm [shape: f32[16,32], index: 5, kind: output, shape index: {}]
  %s6 = sld [smem:[#allocation0]]
  $region30: #{tpu_custom_call.1} parent=0
    _
  %s8 = ssub.s32 1, %s6
  %s9 = scalar_select 0, %s8, %s6
  $region1: #{tpu_custom_call.1} parent=0
    #allocation2 [shape = 'u8[8192]{0}', space=vmem, size = 0x2000, scoped, tag = 'output window, operand 0, single buffered']
    #allocation3 [shape = 's32[1]{0}', space=sflag, size = 0x4, scoped, tag = 'scoped memory for tpu_custom_call.1']
    %10 = vsyncpa [#allocation3], 0
    // Predicated region
    $region2: #{tpu_custom_call.1} parent=1 // pred_check
      _
    $region3: #{tpu_custom_call.1} parent=1 // pred_check_branch
      %12 = sbr.rel (0) target = $region5
    $region4: #{tpu_custom_call.1} parent=1 // pred_region
      _
    $region5: #{tpu_custom_call.1} parent=1 // pred_fallthru
      _
    // Predicated region
    $region6: #{tpu_custom_call.1} parent=1 // pred_check
      _
    $region7: #{tpu_custom_call.1} parent=1 // pred_check_branch
      %14 = sbr.rel (0) target = $region9
    $region8: #{tpu_custom_call.1} parent=1 // pred_region
      _
    $region9: #{tpu_custom_call.1} parent=1 // pred_fallthru
      _
    // Predicated region
    $region10: #{tpu_custom_call.1} parent=1 // pred_check
      _
    $region11: #{tpu_custom_call.1} parent=1 // pred_check_branch
      %16 = sbr.rel (0) target = $region13
    $region12: #{tpu_custom_call.1} parent=1 // pred_region
      _
    $region13: #{tpu_custom_call.1} parent=1 // pred_fallthru
      _
    // Predicated region
    $region14: #{tpu_custom_call.1} parent=1 // pred_check
      _
    $region15: #{tpu_custom_call.1} parent=1 // pred_check_branch
      %18 = sbr.rel (0) target = $region17
    $region16: #{tpu_custom_call.1} parent=1 // pred_region
      _
    $region17: #{tpu_custom_call.1} parent=1 // pred_fallthru
      _
    // Predicated region
    $region18: #{tpu_custom_call.1} parent=1 // pred_check
      _
    $region19: #{tpu_custom_call.1} parent=1 // pred_check_branch
      %20 = sbr.rel (0) target = $region21
    $region20: #{tpu_custom_call.1} parent=1 // pred_region
      _
    $region21: #{tpu_custom_call.1} parent=1 // pred_fallthru
      _
    %v21 = vld [vmem:[%s0] sm:$0xff]
    %v22 = vld [vmem:[%s0 + $0x8] sm:$0xff]
    %v23 = vld [vmem:[%s1] sm:$0xff]
    %v24 = vld [vmem:[%s1 + $0x8] sm:$0xff]
    %v25 = vld [vmem:[%s1 + $0x10] sm:$0xff]
    %v26 = vld [vmem:[%s1 + $0x18] sm:$0xff]
    %v27 = vld [vmem:[%s1 + $0x20] sm:$0xff]
    %v28 = vld [vmem:[%s1 + $0x28] sm:$0xff]
    %v29 = vld [vmem:[%s1 + $0x30] sm:$0xff]
    %v30 = vld [vmem:[%s1 + $0x38] sm:$0xff]
    %v31 = vld [vmem:[%s1 + $0x40] sm:$0xff]
    %v32 = vld [vmem:[%s1 + $0x48] sm:$0xff]
    %v33 = vld [vmem:[%s1 + $0x50] sm:$0xff]
    %v34 = vld [vmem:[%s1 + $0x58] sm:$0xff]
    %v35 = vld [vmem:[%s2] sm:$0xff]
    %v36 = vld [vmem:[%s2 + $0x8] sm:$0xff]
    %v37 = vld [vmem:[%s2 + $0x10] sm:$0xff]
    %v38 = vld [vmem:[%s2 + $0x18] sm:$0xff]
    %v39 = vld [vmem:[%s2 + $0x20] sm:$0xff]
    %v40 = vld [vmem:[%s2 + $0x28] sm:$0xff]
    %v41 = vld [vmem:[%s2 + $0x30] sm:$0xff]
    %v42 = vld [vmem:[%s2 + $0x38] sm:$0xff]
    %v43 = vld [vmem:[%s2 + $0x40] sm:$0xff]
    %v44 = vld [vmem:[%s2 + $0x48] sm:$0xff]
    %vm45 = vcmask 261120
    %v47 = vsel %vm45, %v21, 0
    %v50 = vsel %vm45, %v22, 0
    %52 = vmatpush.msra.mxu0 0.0
    %53 = vmatpush.msra.mxu0 0.0
    %54 = vmatpush.msra.mxu0 0.0
    %55 = vmatpush.msra.mxu0 0.0
    %56 = vmatpush.msra.mxu0 0.0
    %57 = vmatpush.msra.mxu0 0.0
    %58 = vmatpush.msra.mxu0 0.0
    %59 = vmatpush.msra.mxu0 0.0
    %60 = vmatpush.msra.mxu0 0.0
    %61 = vmatpush.msra.mxu0 0.0
    %62 = vmatpush.msra.mxu0 0.0
    %63 = vmatpush.msra.mxu0 0.0
    %64 = vmatpush.msra.mxu0 %v26
    %65 = vmatpush.msra.mxu0 %v25
    %66 = vmatpush.msra.mxu0 %v24
    %67 = vmatpush.msra.mxu0 %v23
    %68 = vmatmul.f32.gmra.mxu0 %v47
    %v69 = vpop.f32.mrf.mxu0
    %v70 = vadd.f32 %v35, %v69
    %71 = vmatmul.f32.gmra.mxu0 %v50
    %v72 = vpop.f32.mrf.mxu0
    %v73 = vadd.f32 %v36, %v72
    %74 = vdwg.mxu0
    %75 = vmatpush.msra.mxu0 0.0
    %76 = vmatpush.msra.mxu0 0.0
    %77 = vmatpush.msra.mxu0 0.0
    %78 = vmatpush.msra.mxu0 0.0
    %79 = vmatpush.msra.mxu0 0.0
    %80 = vmatpush.msra.mxu0 0.0
    %81 = vmatpush.msra.mxu0 0.0
    %82 = vmatpush.msra.mxu0 0.0
    %83 = vmatpush.msra.mxu0 0.0
    %84 = vmatpush.msra.mxu0 0.0
    %85 = vmatpush.msra.mxu0 0.0
    %86 = vmatpush.msra.mxu0 0.0
    %87 = vmatpush.msra.mxu0 %v30
    %88 = vmatpush.msra.mxu0 %v29
    %89 = vmatpush.msra.mxu0 %v28
    %90 = vmatpush.msra.mxu0 %v27
    %91 = vmatmul.f32.gmra.mxu0 %v47
    %v92 = vpop.f32.mrf.mxu0
    %v93 = vadd.f32 %v37, %v92
    %94 = vmatmul.f32.gmra.mxu0 %v50
    %v95 = vpop.f32.mrf.mxu0
    %v96 = vadd.f32 %v38, %v95
    %97 = vdwg.mxu0
    %v98 = vld [vmem:[%s4] sm:$0xff]
    %v99 = vld [vmem:[%s4 + $0x8] sm:$0xff]
    %v100 = vld [vmem:[%s4 + $0x10] sm:$0xff]
    %v101 = vld [vmem:[%s4 + $0x18] sm:$0xff]
    %v102 = vmul.f32 %v93, %v98
    %v103 = vmul.f32 %v96, %v99
    %v104 = vmul.f32 %v93, %v100
    %v105 = vmul.f32 %v96, %v101
    %v106 = vld [vmem:[%s3] sm:$0xff]
    %v107 = vld [vmem:[%s3 + $0x8] sm:$0xff]
    %v109 = vsel %vm45, %v106, 0
    %v112 = vsel %vm45, %v107, 0
    %114 = vmatpush.msra.mxu0 0.0
    %115 = vmatpush.msra.mxu0 0.0
    %116 = vmatpush.msra.mxu0 0.0
    %117 = vmatpush.msra.mxu0 0.0
    %118 = vmatpush.msra.mxu0 0.0
    %119 = vmatpush.msra.mxu0 0.0
    %120 = vmatpush.msra.mxu0 0.0
    %121 = vmatpush.msra.mxu0 0.0
    %122 = vmatpush.msra.mxu0 0.0
    %123 = vmatpush.msra.mxu0 0.0
    %124 = vmatpush.msra.mxu0 0.0
    %125 = vmatpush.msra.mxu0 0.0
    %126 = vmatpush.msra.mxu0 %v105
    %127 = vmatpush.msra.mxu0 %v104
    %128 = vmatpush.msra.mxu0 %v103
    %129 = vmatpush.msra.mxu0 %v102
    %130 = vmatmul.f32.gmra.mxu0 %v109
    %v131 = vpop.f32.mrf.mxu0
    %v132 = vadd.f32 0.0, %v131
    %133 = vmatmul.f32.gmra.mxu0 %v112
    %v134 = vpop.f32.mrf.mxu0
    %v135 = vadd.f32 0.0, %v134
    %136 = vdwg.mxu0
    %v137 = vmul.f32 %v70, %v132
    %v138 = vmul.f32 %v73, %v135
    %v140 = vsel %vm45, %v137, 0
    %v143 = vsel %vm45, %v138, 0
    %145 = vmatpush.msra.mxu0 0.0
    %146 = vmatpush.msra.mxu0 0.0
    %147 = vmatpush.msra.mxu0 0.0
    %148 = vmatpush.msra.mxu0 0.0
    %149 = vmatpush.msra.mxu0 0.0
    %150 = vmatpush.msra.mxu0 0.0
    %151 = vmatpush.msra.mxu0 0.0
    %152 = vmatpush.msra.mxu0 0.0
    %153 = vmatpush.msra.mxu0 0.0
    %154 = vmatpush.msra.mxu0 0.0
    %155 = vmatpush.msra.mxu0 0.0
    %156 = vmatpush.msra.mxu0 0.0
    %157 = vmatpush.msra.mxu0 %v34
    %158 = vmatpush.msra.mxu0 %v33
    %159 = vmatpush.msra.mxu0 %v32
    %160 = vmatpush.msra.mxu0 %v31
    %161 = vmatmul.f32.gmra.mxu0 %v140
    %v162 = vpop.f32.mrf.mxu0
    %v163 = vadd.f32 %v39, %v162
    %164 = vmatmul.f32.gmra.mxu0 %v143
    %v165 = vpop.f32.mrf.mxu0
    %v166 = vadd.f32 %v40, %v165
    %167 = vdwg.mxu0
    %v168 = vadd.f32 %v163, %v21
    %v169 = vadd.f32 %v166, %v22
    %v170 = vsel %vm45, %v168, 0.0
    %171 = vadd.xlane.f32.xlu0 %v170
    %v172 = vpop.xlane.xlu0 %171
    %v173 = vsel %vm45, %v169, 0.0
    %174 = vadd.xlane.f32.xlu0 %v173
    %v175 = vpop.xlane.xlu0 %174
    %v176 = vrcp.pop 32.0
    %v177 = vmul.f32 32.0, %v176
    %v178 = vsub.f32 1.0, %v177
    %v179 = vmul.f32 %v176, %v178
    %v180 = vadd.f32 %v176, %v179
    %vm181 = vweird.f32 %v176
    %v182 = vsel %vm181, %v176, %v180
    %v183 = vmul.f32 %v172, %v182
    %v184 = vmul.f32 %v175, %v182
    %v185 = vsub.f32 %v168, %v183
    %v186 = vsub.f32 %v169, %v184
    %v187 = vmul.f32 %v185, %v185
    %v188 = vmul.f32 %v186, %v186
    %v189 = vsel %vm45, %v187, 0.0
    %190 = vadd.xlane.f32.xlu0 %v189
    %v191 = vpop.xlane.xlu0 %190
    %v192 = vsel %vm45, %v188, 0.0
    %193 = vadd.xlane.f32.xlu0 %v192
    %v194 = vpop.xlane.xlu0 %193
    %v195 = vmul.f32 %v191, %v182
    %v196 = vmul.f32 %v194, %v182
    %v197 = vadd.f32 %v195, 1e-12
    %v198 = vadd.f32 %v196, 1e-12
    %v199 = vrsqrt.pop %v197
    %v200 = vmul.f32 %v199, %v197
    %v201 = vmul.f32 %v200, %v199
    %v202 = vmul.f32 0.5, %v201
    %v203 = vsub.f32 1.5, %v202
    %v204 = vmul.f32 %v199, %v203
    %vm205 = vweird.f32 %v197
    %vm206 = vweird.f32 %v199
    %vm207 = vmor %vm205, %vm206
    %v208 = vsel %vm207, %v199, %v204
    %v209 = vrsqrt.pop %v198
    %v210 = vmul.f32 %v209, %v198
    %v211 = vmul.f32 %v210, %v209
    %v212 = vmul.f32 0.5, %v211
    %v213 = vsub.f32 1.5, %v212
    %v214 = vmul.f32 %v209, %v213
    %vm215 = vweird.f32 %v198
    %vm216 = vweird.f32 %v209
    %vm217 = vmor %vm215, %vm216
    %v218 = vsel %vm217, %v209, %v214
    %v219 = vmul.f32 %v185, %v208
    %v220 = vmul.f32 %v186, %v218
    %v221 = vmul.f32 %v219, %v41
    %v222 = vmul.f32 %v220, %v42
    %v223 = vadd.f32 %v221, %v43
    %v224 = vadd.f32 %v222, %v44
    %225 = vst.msk [vmem:[#allocation2] sm:$0xff] %vm45, %v223
    %226 = vst.msk [vmem:[#allocation2 + $0x8] sm:$0xff] %vm45, %v224
    // Predicated region
    $region22: #{tpu_custom_call.1} parent=1 // pred_check
      _
    $region23: #{tpu_custom_call.1} parent=1 // pred_check_branch
      %228 = sbr.rel (0) target = $region25
    $region24: #{tpu_custom_call.1} parent=1 // pred_region
      %230 = vsyncadd [#allocation3], 0
      %s231 = sshll.u32 [#allocation2], 4
      %s232 = int_to_ptr.vmem [resolvable:$true] %s231
      %s233 = sshll.u32 %s5, 4
      %s234 = int_to_ptr.hbm [resolvable:$true] %s233
      %239 = dma.vmem_to_hbm [thread:$0]  %s232, 256, %s234, [#allocation3], 128, 128, 8
    $region25: #{tpu_custom_call.1} parent=1 // pred_fallthru
      _
    // Predicated region
    $region26: #{tpu_custom_call.1} parent=1 // pred_check
      _
    $region27: #{tpu_custom_call.1} parent=1 // pred_check_branch
      %241 = sbr.rel (0) target = $region29
    $region28: #{tpu_custom_call.1} parent=1 // pred_region
      %243 = dma.done [#allocation3], 256
    $region29: #{tpu_custom_call.1} parent=1 // pred_fallthru
      _
    %244 = vsyncpa [#allocation3], 1

</llo_original>
